<compile_context>
chip_gen: v5e
topology: v5e:2x2
jax: 0.10.0
libtpu: 0.0.40
codegen_flags: <defaults>
</compile_context>

<pallas_src>
import functools
import math

import jax
import jax.numpy as jnp
from jax.experimental import pallas as pl
from jax.experimental.pallas import tpu as pltpu


def _layer_norm_kernel(x_ref, alpha_ref, bias_ref, o_ref, *, eps, d_model):
    # x_ref / o_ref : (TR, D) row block in VMEM
    # alpha_ref / bias_ref : (1,) scalars in SMEM
    x = x_ref[...].astype(jnp.float32)

    mean = jnp.mean(x, axis=-1, keepdims=True)
    centered = x - mean
    # torch.std defaults to the unbiased estimator (divide by D - 1).
    denom = jnp.float32(max(d_model - 1, 1))
    var = jnp.sum(centered * centered, axis=-1, keepdims=True) / denom
    std = jnp.sqrt(var)

    y = alpha_ref[0] * centered / (std + eps) + bias_ref[0]
    o_ref[...] = y.astype(o_ref.dtype)


@functools.partial(jax.jit, static_argnames=("eps",))
def layer_norm_pallas(x, alpha, bias, eps: float = 1e-6):
    """Custom LayerNormalization over the last dim. x: (..., D)."""
    orig_shape = x.shape
    D = orig_shape[-1]
    N = math.prod(orig_shape[:-1])
    x2 = x.reshape(N, D)

    # Row-tile size: target ~1 MiB per block, multiple of 8 rows, capped at N.
    bytes_per_row = D * jnp.dtype(x.dtype).itemsize
    target_bytes = 1 << 20
    tr = max(8, (target_bytes // max(bytes_per_row, 1)) // 8 * 8)
    tr = min(tr, N)
    if N < 8:
        tr = N  # full-extent leading block dim is always legal

    grid = (pl.cdiv(N, tr),)

    kernel = functools.partial(_layer_norm_kernel, eps=eps, d_model=D)

    out = pl.pallas_call(
        kernel,
        out_shape=jax.ShapeDtypeStruct((N, D), x.dtype),
        grid_spec=pltpu.PrefetchScalarGridSpec(
            num_scalar_prefetch=0,
            grid=grid,
            in_specs=[
                pl.BlockSpec((tr, D), lambda i: (i, 0)),                     # x rows
                pl.BlockSpec(memory_space=pltpu.MemorySpace.SMEM),           # alpha
                pl.BlockSpec(memory_space=pltpu.MemorySpace.SMEM),           # bias
            ],
            out_specs=pl.BlockSpec((tr, D), lambda i: (i, 0)),
        ),
        compiler_params=pltpu.CompilerParams(
            dimension_semantics=("parallel",),
            vmem_limit_bytes=48 * 1024 * 1024,
        ),
    )(x2, alpha, bias)

    return out.reshape(orig_shape)


def decoder_forward(x, encoder_output, src_mask, tgt_mask,
                    alpha, bias, layers=(), eps: float = 1e-6):
    """Mirror of Decoder.forward: run the layer stack, then LayerNormalization."""
    for layer in layers:   # each layer: callable (x, enc_out, src_mask, tgt_mask) -> x
        x = layer(x, encoder_output, src_mask, tgt_mask)
    return layer_norm_pallas(x, alpha, bias, eps=eps)


if __name__ == "__main__":
    # Small deterministic example: batch=2, seq=8, d_model=128 (128-aligned for
    # lane-dense stores).
    B, S, D = 2, 8, 128
    eps = 1e-6

    key = jax.random.PRNGKey(0)
    kx, ke = jax.random.split(key)
    x = jax.random.normal(kx, (B, S, D), dtype=jnp.float32)
    encoder_output = jax.random.normal(ke, (B, S, D), dtype=jnp.float32)
    src_mask = None
    tgt_mask = None

    # LayerNormalization parameters (torch.ones(1) / torch.zeros(1)).
    alpha = jnp.ones((1,), dtype=jnp.float32)
    bias = jnp.zeros((1,), dtype=jnp.float32)

    out = decoder_forward(x, encoder_output, src_mask, tgt_mask,
                          alpha, bias, layers=(), eps=eps)
    out = jax.block_until_ready(out)

    # Pure-JAX reference (torch std is unbiased -> ddof=1).
    mean = jnp.mean(x, axis=-1, keepdims=True)
    std = jnp.std(x, axis=-1, ddof=1, keepdims=True)
    ref = alpha[0] * (x - mean) / (std + eps) + bias[0]

    assert out.shape == (B, S, D)
    assert jnp.allclose(out, ref, atol=1e-5, rtol=1e-5), "mismatch vs reference"

    print("KERNEL_OK")
</pallas_src>

<mosaic_0001>
module attributes {stable_mosaic.version = 11 : i64} {
  func.func @_layer_norm_kernel(%arg0: i32, %arg1: memref<16x128xf32, #tpu.memory_space<vmem>>, %arg2: memref<1xf32, #tpu.memory_space<smem>>, %arg3: memref<1xf32, #tpu.memory_space<smem>>, %arg4: memref<16x128xf32, #tpu.memory_space<vmem>>) attributes {dimension_semantics = [#tpu.dimension_semantics<parallel>], iteration_bounds = array<i64: 1>, scalar_prefetch = 0 : i64, scratch_operands = 0 : i64, tpu.core_type = #tpu.core_type<tc>, window_params = [{transform_indices = @transform_0, window_bounds = array<i64: 16, 128>}, {transform_indices = @transform_1, window_bounds = array<i64: 1>}, {transform_indices = @transform_2, window_bounds = array<i64: 1>}, {transform_indices = @transform_3, window_bounds = array<i64: 16, 128>}]} {
    %c0 = arith.constant 0 : index
    %c0_0 = arith.constant 0 : index
    %0 = vector.load %arg1[%c0, %c0_0] : memref<16x128xf32, #tpu.memory_space<vmem>>, vector<16x128xf32>
    %cst = arith.constant dense<0.000000e+00> : vector<16xf32>
    %1 = vector.multi_reduction <add>, %0, %cst [1] : vector<16x128xf32> to vector<16xf32>
    %2 = vector.shape_cast %1 : vector<16xf32> to vector<16x1xf32>
    %cst_1 = arith.constant 1.280000e+02 : f32
    %3 = vector.broadcast %cst_1 : f32 to vector<16x1xf32>
    %4 = arith.divf %2, %3 : vector<16x1xf32>
    %5 = vector.broadcast %4 : vector<16x1xf32> to vector<16x128xf32>
    %6 = arith.subf %0, %5 : vector<16x128xf32>
    %7 = arith.mulf %6, %6 : vector<16x128xf32>
    %cst_2 = arith.constant dense<0.000000e+00> : vector<16xf32>
    %8 = vector.multi_reduction <add>, %7, %cst_2 [1] : vector<16x128xf32> to vector<16xf32>
    %9 = vector.shape_cast %8 : vector<16xf32> to vector<16x1xf32>
    %cst_3 = arith.constant 1.270000e+02 : f32
    %10 = vector.broadcast %cst_3 : f32 to vector<16x1xf32>
    %11 = arith.divf %9, %10 : vector<16x1xf32>
    %12 = math.sqrt %11 : vector<16x1xf32>
    %c0_4 = arith.constant 0 : index
    %13 = memref.load %arg2[%c0_4] : memref<1xf32, #tpu.memory_space<smem>>
    %14 = vector.broadcast %13 : f32 to vector<16x128xf32>
    %15 = arith.mulf %14, %6 : vector<16x128xf32>
    %cst_5 = arith.constant 9.99999997E-7 : f32
    %16 = vector.broadcast %cst_5 : f32 to vector<16x1xf32>
    %17 = arith.addf %12, %16 : vector<16x1xf32>
    %18 = vector.broadcast %17 : vector<16x1xf32> to vector<16x128xf32>
    %19 = arith.divf %15, %18 : vector<16x128xf32>
    %c0_6 = arith.constant 0 : index
    %20 = memref.load %arg3[%c0_6] : memref<1xf32, #tpu.memory_space<smem>>
    %21 = vector.broadcast %20 : f32 to vector<16x128xf32>
    %22 = arith.addf %19, %21 : vector<16x128xf32>
    %c0_7 = arith.constant 0 : index
    %c0_8 = arith.constant 0 : index
    %23 = vector.load %arg4[%c0_7, %c0_8] : memref<16x128xf32, #tpu.memory_space<vmem>>, vector<16x128xf32>
    tpu.vector_store %arg4[%c0_7, %c0_8], %22 {strides = array<i32>} : memref<16x128xf32, #tpu.memory_space<vmem>>, vector<16x128xf32>,
    return
  }
  func.func @transform_0(%arg0: i32) -> (i32, i32) {
    %c0_i32 = arith.constant 0 : i32
    %c0_i32_0 = arith.constant 0 : i32
    return %arg0, %c0_i32 : i32, i32
  }
  func.func @transform_1(%arg0: i32) -> i32 {
    %c0_i32 = arith.constant 0 : i32
    %c0_i32_0 = arith.constant 0 : i32
    return %c0_i32 : i32
  }
  func.func @transform_2(%arg0: i32) -> i32 {
    %c0_i32 = arith.constant 0 : i32
    %c0_i32_0 = arith.constant 0 : i32
    return %c0_i32 : i32
  }
  func.func @transform_3(%arg0: i32) -> (i32, i32) {
    %c0_i32 = arith.constant 0 : i32
    %c0_i32_0 = arith.constant 0 : i32
    return %arg0, %c0_i32 : i32, i32
  }
}

</mosaic_0001>

<llo_original>
// kernel: layer_norm_pallas.1
$region0: #{layer_norm_pallas.1}
  #allocation0 [shape = 'u32[]', space=smem, size = 0x4, offset = 0x4, fixed_abs, tag = 'smem constant byte address 0x4 - core index']
  #allocation1 [shape = 'u32[72,128]{1,0:T(1,128)}', space=vmem, size = 0x9000, scoped, tag = 'internal scratch']
  #allocation2 [shape = 'f32[1]{0:T(128)S(6)}', space=smem, size = 0x200, scoped, tag = 'scoped memory for layer_norm_pallas.1']
  #allocation3 [shape = 'f32[1]{0:T(128)S(6)}', space=smem, size = 0x200, scoped, tag = 'scoped memory for layer_norm_pallas.1']
  %s0 = inlined_call_operand.hbm [shape: f32[16,128], index: 0, kind: input, shape index: {}]
  %s1 = inlined_call_operand.<no memory space> [shape: f32[1], index: 1, kind: input, shape index: {}]
  %s2 = inlined_call_operand.<no memory space> [shape: f32[1], index: 2, kind: input, shape index: {}]
  %s3 = inlined_call_operand.hbm [shape: f32[16,128], index: 3, kind: output, shape index: {}]
  %s4 = sld [smem:[#allocation0]]
  $region26: #{layer_norm_pallas.1} parent=0
    _
  %s6 = ssub.s32 1, %s4
  %s7 = scalar_select 0, %s6, %s4
  %8 = sst [smem:[#allocation2]] %s1
  %9 = sst [smem:[#allocation3]] %s2
  $region1: #{layer_norm_pallas.1} parent=0
    #allocation4 [shape = 'u8[8192]{0}', space=vmem, size = 0x2000, scoped, tag = 'input window, operand 0, single buffered']
    #allocation5 [shape = 's32[1]{0}', space=sflag, size = 0x4, scoped, tag = 'scoped memory for layer_norm_pallas.1']
    #allocation6 [shape = 's32[1]{0}', space=sflag, size = 0x4, scoped, tag = 'scoped memory for layer_norm_pallas.1']
    #allocation7 [shape = 'u8[8192]{0}', space=vmem, size = 0x2000, scoped, tag = 'output window, operand 0, single buffered']
    %10 = vsyncpa [#allocation5], 0
    %11 = vsyncpa [#allocation6], 0
    // Predicated region
    $region2: #{layer_norm_pallas.1} parent=1 // pred_check
      _
    $region3: #{layer_norm_pallas.1} parent=1 // pred_check_branch
      %13 = sbr.rel (0) target = $region5
    $region4: #{layer_norm_pallas.1} parent=1 // pred_region
      %15 = vsyncadd [#allocation5], 0
      %s16 = sshll.u32 %s0, 4
      %s17 = int_to_ptr.hbm [resolvable:$true] %s16
      %s18 = sshll.u32 [#allocation4], 4
      %s19 = int_to_ptr.vmem [resolvable:$true] %s18
      %24 = dma.hbm_to_vmem [thread:$0]  %s17, 256, %s19, [#allocation5], 128, 128, 8
    $region5: #{layer_norm_pallas.1} parent=1 // pred_fallthru
      _
    // Predicated region
    $region6: #{layer_norm_pallas.1} parent=1 // pred_check
      _
    $region7: #{layer_norm_pallas.1} parent=1 // pred_check_branch
      %26 = sbr.rel (0) target = $region9
    $region8: #{layer_norm_pallas.1} parent=1 // pred_region
      _
    $region9: #{layer_norm_pallas.1} parent=1 // pred_fallthru
      _
    // Predicated region
    $region10: #{layer_norm_pallas.1} parent=1 // pred_check
      _
    $region11: #{layer_norm_pallas.1} parent=1 // pred_check_branch
      %28 = sbr.rel (0) target = $region13
    $region12: #{layer_norm_pallas.1} parent=1 // pred_region
      _
    $region13: #{layer_norm_pallas.1} parent=1 // pred_fallthru
      _
    // Predicated region
    $region14: #{layer_norm_pallas.1} parent=1 // pred_check
      _
    $region15: #{layer_norm_pallas.1} parent=1 // pred_check_branch
      %30 = sbr.rel (0) target = $region17
    $region16: #{layer_norm_pallas.1} parent=1 // pred_region
      %32 = dma.done [#allocation5], 256
    $region17: #{layer_norm_pallas.1} parent=1 // pred_fallthru
      _
    %v33 = vld [vmem:[#allocation4] sm:$0xff]
    %v34 = vld [vmem:[#allocation4 + $0x8] sm:$0xff]
    %35 = vadd.xlane.f32.xlu0 %v33
    %v36 = vpop.xlane.xlu0 %35
    %37 = vadd.xlane.f32.xlu0 %v34
    %v38 = vpop.xlane.xlu0 %37
    %v39 = vrcp.pop 128.0
    %v40 = vmul.f32 128.0, %v39
    %v41 = vsub.f32 1.0, %v40
    %v42 = vmul.f32 %v39, %v41
    %v43 = vadd.f32 %v39, %v42
    %vm44 = vweird.f32 %v39
    %v45 = vsel %vm44, %v39, %v43
    %v46 = vmul.f32 %v36, %v45
    %v47 = vmul.f32 %v38, %v45
    %v48 = vsub.f32 %v33, %v46
    %v49 = vsub.f32 %v34, %v47
    %v50 = vmul.f32 %v48, %v48
    %v51 = vmul.f32 %v49, %v49
    %52 = vadd.xlane.f32.xlu0 %v50
    %v53 = vpop.xlane.xlu0 %52
    %54 = vadd.xlane.f32.xlu0 %v51
    %v55 = vpop.xlane.xlu0 %54
    %v56 = vrcp.pop 127.0
    %v57 = vmul.f32 127.0, %v56
    %v58 = vsub.f32 1.0, %v57
    %v59 = vmul.f32 %v56, %v58
    %v60 = vadd.f32 %v56, %v59
    %vm61 = vweird.f32 %v56
    %v62 = vsel %vm61, %v56, %v60
    %v63 = vmul.f32 %v53, %v62
    %v64 = vmul.f32 %v55, %v62
    %v65 = vrsqrt.pop %v63
    %v66 = vmul.f32 %v65, %v63
    %v67 = vmul.f32 %v66, %v65
    %v68 = vmul.f32 0.5, %v67
    %v69 = vsub.f32 1.5, %v68
    %v70 = vmul.f32 %v65, %v69
    %v71 = vmul.f32 %v63, %v70
    %vm72 = vcmp.eq.f32.partialorder %v63, inf
    %v73 = vsel %vm72, %v63, %v71
    %vm74 = vcmp.eq.f32.partialorder %v63, 0.0
    %v75 = vand.u32 %v63, 2147483648
    %v76 = vsel %vm74, %v75, %v73
    %v77 = vrsqrt.pop %v64
    %v78 = vmul.f32 %v77, %v64
    %v79 = vmul.f32 %v78, %v77
    %v80 = vmul.f32 0.5, %v79
    %v81 = vsub.f32 1.5, %v80
    %v82 = vmul.f32 %v77, %v81
    %v83 = vmul.f32 %v64, %v82
    %vm84 = vcmp.eq.f32.partialorder %v64, inf
    %v85 = vsel %vm84, %v64, %v83
    %vm86 = vcmp.eq.f32.partialorder %v64, 0.0
    %v87 = vand.u32 %v64, 2147483648
    %v88 = vsel %vm86, %v87, %v85
    %s89 = sld [smem:[#allocation2]]
    %v90 = vstv %s89
    %v91 = vmul.f32 %v90, %v48
    %v92 = vmul.f32 %v90, %v49
    %v93 = vadd.f32 %v76, 1e-06
    %v94 = vadd.f32 %v88, 1e-06
    %v95 = vrcp.pop %v93
    %v96 = vmul.f32 %v93, %v95
    %v97 = vsub.f32 1.0, %v96
    %v98 = vmul.f32 %v95, %v97
    %v99 = vadd.f32 %v95, %v98
    %vm100 = vweird.f32 %v93
    %vm101 = vweird.f32 %v95
    %vm102 = vmor %vm100, %vm101
    %v103 = vsel %vm102, %v95, %v99
    %v104 = vand.u32 2147483647, %v93
    %vm105 = vcmp.eq.f32.partialorder %v104, 8.507059e+37
    %v106 = vand.u32 %v93, 2147483648
    %v107 = vor.u32 1.1754944e-38, %v106
    %v108 = vsel %vm105, %v107, %v103
    %v109 = vmul.f32 %v91, %v108
    %v110 = vrcp.pop %v94
    %v111 = vmul.f32 %v94, %v110
    %v112 = vsub.f32 1.0, %v111
    %v113 = vmul.f32 %v110, %v112
    %v114 = vadd.f32 %v110, %v113
    %vm115 = vweird.f32 %v94
    %vm116 = vweird.f32 %v110
    %vm117 = vmor %vm115, %vm116
    %v118 = vsel %vm117, %v110, %v114
    %v119 = vand.u32 2147483647, %v94
    %vm120 = vcmp.eq.f32.partialorder %v119, 8.507059e+37
    %v121 = vand.u32 %v94, 2147483648
    %v122 = vor.u32 1.1754944e-38, %v121
    %v123 = vsel %vm120, %v122, %v118
    %v124 = vmul.f32 %v92, %v123
    %s125 = sld [smem:[#allocation3]]
    %v126 = vstv %s125
    %v127 = vadd.f32 %v109, %v126
    %v128 = vadd.f32 %v124, %v126
    %129 = vst [vmem:[#allocation7] sm:$0xff] %v127
    %130 = vst [vmem:[#allocation7 + $0x8] sm:$0xff] %v128
    // Predicated region
    $region18: #{layer_norm_pallas.1} parent=1 // pred_check
      _
    $region19: #{layer_norm_pallas.1} parent=1 // pred_check_branch
      %132 = sbr.rel (0) target = $region21
    $region20: #{layer_norm_pallas.1} parent=1 // pred_region
      %134 = vsyncadd [#allocation6], 0
      %s135 = sshll.u32 [#allocation7], 4
      %s136 = int_to_ptr.vmem [resolvable:$true] %s135
      %s137 = sshll.u32 %s3, 4
      %s138 = int_to_ptr.hbm [resolvable:$true] %s137
      %143 = dma.vmem_to_hbm [thread:$0]  %s136, 256, %s138, [#allocation6], 128, 128, 8
    $region21: #{layer_norm_pallas.1} parent=1 // pred_fallthru
      _
    // Predicated region
    $region22: #{layer_norm_pallas.1} parent=1 // pred_check
      _
    $region23: #{layer_norm_pallas.1} parent=1 // pred_check_branch
      %145 = sbr.rel (0) target = $region25
    $region24: #{layer_norm_pallas.1} parent=1 // pred_region
      %147 = dma.done [#allocation6], 256
    $region25: #{layer_norm_pallas.1} parent=1 // pred_fallthru
      _
    %148 = vsyncpa [#allocation5], 1
    %149 = vsyncpa [#allocation6], 1

</llo_original>
